<compile_context>
chip_gen: v5e
topology: v5e:2x2
jax: 0.10.0
libtpu: 0.0.40
codegen_flags: <defaults>
</compile_context>

<pallas_src>
import functools
import math

import jax
import jax.numpy as jnp
from jax import lax
from jax.experimental import pallas as pl
from jax.experimental.pallas import tpu as pltpu

_NEG_BIG = -1e30  # acts as -inf for padded class columns (exp() underflows to 0)


# TODO(synk): log_vmf_norm_const is referenced but not defined in the source
# module; kernel and reference both use the uniform-asymptotic approximation
#   log C_d(k) = nu*log(nu + s) - s + 0.5*log(s) + (0.5 - d/2)*log(2*pi),
#   with nu = d/2 - 1, s = sqrt(nu^2 + k^2).
def _log_vmf_norm_const(kappa, dim):
    nu = dim / 2.0 - 1.0
    s = jnp.sqrt(nu * nu + kappa * kappa)
    return (nu * jnp.log(nu + s) - s + 0.5 * jnp.log(s)
            + (0.5 - dim / 2.0) * math.log(2.0 * math.pi))


def _lvn_nc(x, nu):
    """log vMF normalizer without the dim-only constant (constants cancel)."""
    s = jnp.sqrt(nu * nu + x * x)
    return nu * jnp.log(nu + s) - s + 0.5 * jnp.log(s)


def _round_up(x, m):
    return (x + m - 1) // m * m


def _elk_kernel(mu_ref, k1r_ref, k1rsq_ref, cmu_ref, colq_ref, ccol_ref,
                out_ref, m_sc, l_sc, *, nu):
    """One (batch-tile, class-tile) step of the online logsumexp over classes."""
    j = pl.program_id(1)  # class-tile index (reduction axis, innermost)

    @pl.when(j == 0)
    def _init():
        m_sc[...] = jnp.full(m_sc.shape, -jnp.inf, m_sc.dtype)
        l_sc[...] = jnp.zeros(l_sc.shape, l_sc.dtype)

    f32 = jnp.float32
    # MXU: class prototypes are pre-scaled by 2*rho*kappa2 in the wrapper, so
    # this product is (2*rho*kappa2*cos), accumulated in f32.
    dot = lax.dot_general(mu_ref[...], cmu_ref[...], (((1,), (1,)), ((), ())),
                          preferred_element_type=f32)              # (TB, TC)

    # q = nu^2 + rho^2*kappa3^2
    #   = (rho*k1)^2 + [(rho*k2)^2 + nu^2] + (rho*k1) * (2*rho*k2*cos)
    q = dot * k1r_ref[...] + k1rsq_ref[...] + colq_ref[...]        # (TB, TC)
    s3 = jnp.sqrt(q)
    # ppk' = rho*lvn_nc(k2) - lvn_nc(rho*kappa3)
    #      = ccol - (nu*log(nu + s3) - s3 + 0.5*log(s3))
    ppk = (ccol_ref[...] + s3) - nu * jnp.log(nu + s3) - 0.5 * jnp.log(s3)

    # online logsumexp over class tiles.
    m_prev = m_sc[...]
    m_new = jnp.maximum(m_prev, jnp.max(ppk, axis=1, keepdims=True))
    l_sc[...] = (jnp.exp(m_prev - m_new) * l_sc[...]
                 + jnp.sum(jnp.exp(ppk - m_new), axis=1, keepdims=True))
    m_sc[...] = m_new

    @pl.when(j == pl.num_programs(1) - 1)
    def _finalize():
        out_ref[...] = m_sc[...] + jnp.log(l_sc[...])               # per-row lse


def elk_loss(pred, unc, y, features, classifier_weight,
             inv_temp=10.0, rho=1.0, block_b=256, max_block_c=None,
             input_dtype=jnp.bfloat16):
    """Pallas implementation of ExpectedLikelihoodKernel.forward."""
    del pred  # unused by the reference forward math (kept for signature parity)
    B, D = features.shape
    C = classifier_weight.shape[0]
    rho = float(rho)
    nu = D / 2.0 - 1.0
    f32 = jnp.float32

    # ---- O(B*D) / O(C*D) preprocessing, hoisted out of the kernel (runs once) ----
    f = features.astype(f32)
    f_sq = jnp.sum(f * f, axis=-1, keepdims=True)
    batch_mu = f * lax.rsqrt(f_sq + 1e-24)                           # (B, D)
    kappa1 = (1.0 / unc.astype(f32)).reshape(B, 1)                   # (B, 1)

    w = classifier_weight.astype(f32)
    w_sq = jnp.sum(w * w, axis=-1, keepdims=True)                    # (C, 1)
    class_mu = w * lax.rsqrt(w_sq + 1e-24)                           # (C, D)
    class_kappa = jnp.maximum(jnp.sqrt(w_sq), 1.0) * inv_temp        # (C, 1)
    class_col = rho * _lvn_nc(class_kappa, nu)                       # (C, 1)
    # NOTE: rho*logC(kappa1) and all dim-only constants are per-row / global
    # constants that cancel exactly in (lse - picked); they are dropped.

    # kernel operands with rho / 2*rho*kappa2 folded in:
    mu_in = batch_mu.astype(input_dtype)                             # (B, D)
    k1r = rho * kappa1                                               # (B, 1)
    k1rsq = k1r * k1r                                                # (B, 1)
    cmu_in = (class_mu * (2.0 * rho * class_kappa)).astype(input_dtype)  # (C, D)
    colq = ((rho * class_kappa) ** 2 + nu * nu).reshape(1, C)        # (1, C)
    ccol = class_col.reshape(1, C)                                   # (1, C)

    # target-class term ("picked"): O(B*D), computed once in f32 in XLA.
    mu_y = class_mu[y]                                               # (B, D)
    ck_y = class_kappa[y, 0]                                         # (B,)
    ccol_y = class_col[y, 0]                                         # (B,)
    cos_y = jnp.sum(batch_mu * mu_y, axis=-1)                        # (B,)
    k1f = kappa1[:, 0]
    kap3_y = jnp.sqrt(k1f * k1f + ck_y * ck_y + 2.0 * k1f * ck_y * cos_y)
    picked = ccol_y - _lvn_nc(rho * kap3_y, nu)                      # (B,)

    # ---- tiling / padding ----
    in_bytes = jnp.dtype(input_dtype).itemsize
    sub = 8 * (4 // in_bytes)             # sublane multiple: 8 f32 / 16 bf16 / 32 fp8
    try:
        vmem_cap = int(getattr(pltpu.get_tpu_info(), "vmem_capacity_bytes",
                               64 * 1024 * 1024))
    except Exception:  # no hardware info available (e.g. interpret mode)
        vmem_cap = 64 * 1024 * 1024
    if max_block_c is None:
        max_block_c = 512 if vmem_cap <= 64 * 1024 * 1024 else 1024  # v7x vs v5e/v6e
    max_block_c = max(128, _round_up(max_block_c, 128))

    block_b = max(sub, _round_up(min(block_b, _round_up(B, sub)), sub))
    # keep >= 2 batch tiles when there is enough work so the "parallel" axis
    # can shard across both v7x TensorCores.
    if B >= 256 and _round_up(B, block_b) // block_b < 2:
        block_b = _round_up((B + 1) // 2, sub)
    B_pad = _round_up(B, block_b)

    if C <= max_block_c:
        block_c, C_pad = C, C                  # single class tile (full-dim block)
    else:
        block_c = max_block_c
        C_pad = _round_up(C, block_c)

    def pad_rows(x, total, value):
        p = total - x.shape[0]
        if p == 0:
            return x
        return jnp.concatenate(
            [x, jnp.full((p,) + x.shape[1:], value, x.dtype)], axis=0)

    def pad_cols(x, total, value):
        p = total - x.shape[1]
        if p == 0:
            return x
        return jnp.concatenate(
            [x, jnp.full(x.shape[:1] + (p,), value, x.dtype)], axis=1)

    mu_p = pad_rows(mu_in, B_pad, 0)
    k1r_p = pad_rows(k1r, B_pad, rho)                      # pad as if unc == 1
    k1rsq_p = pad_rows(k1rsq, B_pad, rho * rho)
    cmu_p = pad_rows(cmu_in, C_pad, 0)
    colq_p = pad_cols(colq, C_pad, nu * nu + rho * rho)    # pad as if ckap == 1
    ccol_p = pad_cols(ccol, C_pad, _NEG_BIG)               # mask padded classes

    nb, nc = B_pad // block_b, C_pad // block_c

    # VMEM budget: double-buffered input blocks + live (TB,TC) f32 temporaries.
    est = (2 * (block_b + block_c) * D * in_bytes
           + 2 * (2 * block_b + 2 * block_c) * 4
           + 8 * block_b * block_c * 4
           + 4 * block_b * 4)
    cap = int(0.70 * vmem_cap)                             # ~45 MiB on v7x, ~90 MiB on v5e/v6e
    vmem_limit = int(min(cap, max(32 * 1024 * 1024, int(1.5 * est))))

    kernel = functools.partial(_elk_kernel, nu=nu)

    lse = pl.pallas_call(
        kernel,
        out_shape=jax.ShapeDtypeStruct((B_pad, 1), jnp.float32),
        grid_spec=pltpu.PrefetchScalarGridSpec(
            num_scalar_prefetch=0,
            grid=(nb, nc),
            in_specs=[
                pl.BlockSpec((block_b, D), lambda i, j: (i, 0)),   # normalized features
                pl.BlockSpec((block_b, 1), lambda i, j: (i, 0)),   # rho*kappa1
                pl.BlockSpec((block_b, 1), lambda i, j: (i, 0)),   # (rho*kappa1)^2
                pl.BlockSpec((block_c, D), lambda i, j: (j, 0)),   # 2*rho*k2 * class_mu
                pl.BlockSpec((1, block_c), lambda i, j: (0, j)),   # (rho*k2)^2 + nu^2
                pl.BlockSpec((1, block_c), lambda i, j: (0, j)),   # rho*lvn_nc(k2)
            ],
            out_specs=pl.BlockSpec((block_b, 1), lambda i, j: (i, 0)),  # per-row lse
            scratch_shapes=[pltpu.VMEM((block_b, 1), jnp.float32)] * 2,  # m, l
        ),
        compiler_params=pltpu.CompilerParams(
            dimension_semantics=("parallel", "arbitrary"),
            vmem_limit_bytes=vmem_limit),
    )(mu_p, k1r_p, k1rsq_p, cmu_p, colq_p, ccol_p)

    # torch's (B,1)+(B,) broadcast-mean over (B,B) == mean_i(lse_i - picked_i).
    return jnp.mean(lse[:B, 0] - picked)


def _ref_loss(pred, unc, y, features, weight, inv_temp=10.0, rho=1.0):
    """Pure-JAX mirror of the PyTorch forward (correctness check)."""
    del pred
    dim = features.shape[-1]
    w_norm = jnp.linalg.norm(weight, axis=-1)
    class_mu = weight / jnp.maximum(w_norm, 1e-12)[:, None]
    class_kappa = jnp.maximum(w_norm, 1.0) * inv_temp
    f_norm = jnp.linalg.norm(features, axis=-1)
    batch_mu = features / jnp.maximum(f_norm, 1e-12)[:, None]
    batch_kappa = 1.0 / unc
    kappa3 = jnp.linalg.norm(
        (batch_kappa[:, None] * batch_mu)[:, None, :]
        + (class_kappa[:, None] * class_mu)[None, :, :], axis=-1)
    ppk = (rho * (_log_vmf_norm_const(batch_kappa[:, None], dim)
                  + _log_vmf_norm_const(class_kappa[None, :], dim))
           - _log_vmf_norm_const(rho * kappa3, dim))
    picked = jnp.take_along_axis(ppk, y[:, None], axis=1)            # (B, 1)
    lse = jax.scipy.special.logsumexp(ppk, axis=1)                   # (B,)
    # torch broadcasts (B,1) + (B,) -> (B,B) before .mean(); replicate that.
    return jnp.mean(-picked + lse[None, :])


if __name__ == "__main__":
    key = jax.random.PRNGKey(0)

    def make_inputs(k, B, C, D):
        k1, k2, k3, k4, k5 = jax.random.split(k, 5)
        features = jax.random.normal(k1, (B, D), jnp.float32)
        unc = jax.random.uniform(k2, (B,), jnp.float32, minval=0.05, maxval=0.5)
        y = jax.random.randint(k3, (B,), 0, C, dtype=jnp.int32)
        weight = jax.random.normal(k4, (C, D), jnp.float32) * 0.2   # nn.Linear(D,C).weight
        pred = jax.random.normal(k5, (B, C), jnp.float32)           # unused by forward math
        return pred, unc, y, features, weight

    k0, k1 = jax.random.split(key)

    # 1) small single-class-tile case, f32 MXU path, tight tolerance.
    pred, unc, y, feats, w = make_inputs(k0, B=16, C=16, D=32)
    loss = jax.block_until_ready(
        elk_loss(pred, unc, y, feats, w, inv_temp=10.0, input_dtype=jnp.float32))
    ref = _ref_loss(pred, unc, y, feats, w, inv_temp=10.0)
    assert jnp.allclose(loss, ref, rtol=1e-3, atol=1e-3), (loss, ref)

    # 2) multi class-tile path (online logsumexp across tiles) + row/class padding.
    pred2, unc2, y2, feats2, w2 = make_inputs(k1, B=52, C=300, D=64)
    loss2 = jax.block_until_ready(
        elk_loss(pred2, unc2, y2, feats2, w2, inv_temp=8.0, max_block_c=128,
                 input_dtype=jnp.float32))
    ref2 = _ref_loss(pred2, unc2, y2, feats2, w2, inv_temp=8.0)
    assert jnp.allclose(loss2, ref2, rtol=1e-3, atol=1e-3), (loss2, ref2)

    # 3) default bf16 MXU-operand path (f32 accumulate + f32 elementwise math).
    loss3 = jax.block_until_ready(elk_loss(pred, unc, y, feats, w, inv_temp=10.0))
    assert jnp.allclose(loss3, ref, rtol=5e-2, atol=5e-2), (loss3, ref)

    print("KERNEL_OK")
</pallas_src>

<mosaic_0001>
module attributes {stable_mosaic.version = 11 : i64} {
  func.func @_elk_kernel(%arg0: i32, %arg1: i32, %arg2: memref<16x32xf32, #tpu.memory_space<vmem>>, %arg3: memref<16x1xf32, #tpu.memory_space<vmem>>, %arg4: memref<16x1xf32, #tpu.memory_space<vmem>>, %arg5: memref<16x32xf32, #tpu.memory_space<vmem>>, %arg6: memref<1x16xf32, #tpu.memory_space<vmem>>, %arg7: memref<1x16xf32, #tpu.memory_space<vmem>>, %arg8: memref<16x1xf32, #tpu.memory_space<vmem>>, %arg9: memref<16x1xf32, #tpu.memory_space<vmem>>, %arg10: memref<16x1xf32, #tpu.memory_space<vmem>>) attributes {dimension_semantics = [#tpu.dimension_semantics<parallel>, #tpu.dimension_semantics<arbitrary>], iteration_bounds = array<i64: 1, 1>, scalar_prefetch = 0 : i64, scratch_operands = 2 : i64, tpu.core_type = #tpu.core_type<tc>, window_params = [{transform_indices = @transform_0, window_bounds = array<i64: 16, 32>}, {transform_indices = @transform_1, window_bounds = array<i64: 16, 1>}, {transform_indices = @transform_2, window_bounds = array<i64: 16, 1>}, {transform_indices = @transform_3, window_bounds = array<i64: 16, 32>}, {transform_indices = @transform_4, window_bounds = array<i64: 1, 16>}, {transform_indices = @transform_5, window_bounds = array<i64: 1, 16>}, {transform_indices = @transform_6, window_bounds = array<i64: 16, 1>}]} {
    %c0_i32 = arith.constant 0 : i32
    %0 = arith.cmpi eq, %arg1, %c0_i32 : i32
    %1 = arith.extui %0 : i1 to i32
    %c0_i32_0 = arith.constant 0 : i32
    %2 = arith.cmpi ne, %1, %c0_i32_0 : i32
    scf.if %2 {
      %cst_27 = arith.constant 0xFF800000 : f32
      %48 = vector.broadcast %cst_27 : f32 to vector<16x1xf32>
      %c0_28 = arith.constant 0 : index
      %c0_29 = arith.constant 0 : index
      %49 = vector.load %arg9[%c0_28, %c0_29] : memref<16x1xf32, #tpu.memory_space<vmem>>, vector<16x1xf32>
      tpu.vector_store %arg9[%c0_28, %c0_29], %48 {strides = array<i32>} : memref<16x1xf32, #tpu.memory_space<vmem>>, vector<16x1xf32>,
      %cst_30 = arith.constant 0.000000e+00 : f32
      %50 = vector.broadcast %cst_30 : f32 to vector<16x1xf32>
      %c0_31 = arith.constant 0 : index
      %c0_32 = arith.constant 0 : index
      %51 = vector.load %arg10[%c0_31, %c0_32] : memref<16x1xf32, #tpu.memory_space<vmem>>, vector<16x1xf32>
      tpu.vector_store %arg10[%c0_31, %c0_32], %50 {strides = array<i32>} : memref<16x1xf32, #tpu.memory_space<vmem>>, vector<16x1xf32>,
    } else {
    }
    %c0 = arith.constant 0 : index
    %c0_1 = arith.constant 0 : index
    %3 = vector.load %arg2[%c0, %c0_1] : memref<16x32xf32, #tpu.memory_space<vmem>>, vector<16x32xf32>
    %c0_2 = arith.constant 0 : index
    %c0_3 = arith.constant 0 : index
    %4 = vector.load %arg5[%c0_2, %c0_3] : memref<16x32xf32, #tpu.memory_space<vmem>>, vector<16x32xf32>
    %cst = arith.constant dense<0.000000e+00> : vector<16x16xf32>
    %5 = tpu.matmul %3, %4, %cst {dimension_numbers = #tpu.dot_dimension_numbers<[1], [1], [0], [0], [0, 0, 1, 0], [], []>} : vector<16x32xf32>, vector<16x32xf32>, vector<16x16xf32> -> vector<16x16xf32>
    %c0_4 = arith.constant 0 : index
    %c0_5 = arith.constant 0 : index
    %6 = vector.load %arg3[%c0_4, %c0_5] : memref<16x1xf32, #tpu.memory_space<vmem>>, vector<16x1xf32>
    %7 = vector.broadcast %6 : vector<16x1xf32> to vector<16x16xf32>
    %8 = arith.mulf %5, %7 : vector<16x16xf32>
    %c0_6 = arith.constant 0 : index
    %c0_7 = arith.constant 0 : index
    %9 = vector.load %arg4[%c0_6, %c0_7] : memref<16x1xf32, #tpu.memory_space<vmem>>, vector<16x1xf32>
    %10 = vector.broadcast %9 : vector<16x1xf32> to vector<16x16xf32>
    %11 = arith.addf %8, %10 : vector<16x16xf32>
    %c0_8 = arith.constant 0 : index
    %c0_9 = arith.constant 0 : index
    %12 = vector.load %arg6[%c0_8, %c0_9] : memref<1x16xf32, #tpu.memory_space<vmem>>, vector<1x16xf32>
    %13 = vector.broadcast %12 : vector<1x16xf32> to vector<16x16xf32>
    %14 = arith.addf %11, %13 : vector<16x16xf32>
    %15 = math.sqrt %14 : vector<16x16xf32>
    %c0_10 = arith.constant 0 : index
    %c0_11 = arith.constant 0 : index
    %16 = vector.load %arg7[%c0_10, %c0_11] : memref<1x16xf32, #tpu.memory_space<vmem>>, vector<1x16xf32>
    %17 = vector.broadcast %16 : vector<1x16xf32> to vector<16x16xf32>
    %18 = arith.addf %17, %15 : vector<16x16xf32>
    %cst_12 = arith.constant 1.500000e+01 : f32
    %19 = vector.broadcast %cst_12 : f32 to vector<16x16xf32>
    %20 = arith.addf %19, %15 : vector<16x16xf32>
    %21 = math.log %20 : vector<16x16xf32>
    %cst_13 = arith.constant 1.500000e+01 : f32
    %22 = vector.broadcast %cst_13 : f32 to vector<16x16xf32>
    %23 = arith.mulf %22, %21 : vector<16x16xf32>
    %24 = arith.subf %18, %23 : vector<16x16xf32>
    %25 = math.log %15 : vector<16x16xf32>
    %cst_14 = arith.constant 5.000000e-01 : f32
    %26 = vector.broadcast %cst_14 : f32 to vector<16x16xf32>
    %27 = arith.mulf %26, %25 : vector<16x16xf32>
    %28 = arith.subf %24, %27 : vector<16x16xf32>
    %c0_15 = arith.constant 0 : index
    %c0_16 = arith.constant 0 : index
    %29 = vector.load %arg9[%c0_15, %c0_16] : memref<16x1xf32, #tpu.memory_space<vmem>>, vector<16x1xf32>
    %cst_17 = arith.constant dense<0xFF800000> : vector<16xf32>
    %30 = vector.multi_reduction <maximumf>, %28, %cst_17 [1] : vector<16x16xf32> to vector<16xf32>
    %31 = vector.shape_cast %30 : vector<16xf32> to vector<16x1xf32>
    %32 = arith.maximumf %29, %31 : vector<16x1xf32>
    %33 = arith.subf %29, %32 : vector<16x1xf32>
    %34 = math.exp %33 : vector<16x1xf32>
    %c0_18 = arith.constant 0 : index
    %c0_19 = arith.constant 0 : index
    %35 = vector.load %arg10[%c0_18, %c0_19] : memref<16x1xf32, #tpu.memory_space<vmem>>, vector<16x1xf32>
    %36 = arith.mulf %34, %35 : vector<16x1xf32>
    %37 = vector.broadcast %32 : vector<16x1xf32> to vector<16x16xf32>
    %38 = arith.subf %28, %37 : vector<16x16xf32>
    %39 = math.exp %38 : vector<16x16xf32>
    %cst_20 = arith.constant dense<0.000000e+00> : vector<16xf32>
    %40 = vector.multi_reduction <add>, %39, %cst_20 [1] : vector<16x16xf32> to vector<16xf32>
    %41 = vector.shape_cast %40 : vector<16xf32> to vector<16x1xf32>
    %42 = arith.addf %36, %41 : vector<16x1xf32>
    %c0_21 = arith.constant 0 : index
    %c0_22 = arith.constant 0 : index
    %43 = vector.load %arg10[%c0_21, %c0_22] : memref<16x1xf32, #tpu.memory_space<vmem>>, vector<16x1xf32>
    tpu.vector_store %arg10[%c0_21, %c0_22], %42 {strides = array<i32>} : memref<16x1xf32, #tpu.memory_space<vmem>>, vector<16x1xf32>,
    %c0_23 = arith.constant 0 : index
    %c0_24 = arith.constant 0 : index
    %44 = vector.load %arg9[%c0_23, %c0_24] : memref<16x1xf32, #tpu.memory_space<vmem>>, vector<16x1xf32>
    tpu.vector_store %arg9[%c0_23, %c0_24], %32 {strides = array<i32>} : memref<16x1xf32, #tpu.memory_space<vmem>>, vector<16x1xf32>,
    %c0_i32_25 = arith.constant 0 : i32
    %45 = arith.cmpi eq, %arg1, %c0_i32_25 : i32
    %46 = arith.extui %45 : i1 to i32
    %c0_i32_26 = arith.constant 0 : i32
    %47 = arith.cmpi ne, %46, %c0_i32_26 : i32
    scf.if %47 {
      %c0_27 = arith.constant 0 : index
      %c0_28 = arith.constant 0 : index
      %48 = vector.load %arg9[%c0_27, %c0_28] : memref<16x1xf32, #tpu.memory_space<vmem>>, vector<16x1xf32>
      %c0_29 = arith.constant 0 : index
      %c0_30 = arith.constant 0 : index
      %49 = vector.load %arg10[%c0_29, %c0_30] : memref<16x1xf32, #tpu.memory_space<vmem>>, vector<16x1xf32>
      %50 = math.log %49 : vector<16x1xf32>
      %51 = arith.addf %48, %50 : vector<16x1xf32>
      %c0_31 = arith.constant 0 : index
      %c0_32 = arith.constant 0 : index
      %52 = vector.load %arg8[%c0_31, %c0_32] : memref<16x1xf32, #tpu.memory_space<vmem>>, vector<16x1xf32>
      tpu.vector_store %arg8[%c0_31, %c0_32], %51 {strides = array<i32>} : memref<16x1xf32, #tpu.memory_space<vmem>>, vector<16x1xf32>,
    } else {
    }
    return
  }
  func.func @transform_0(%arg0: i32, %arg1: i32) -> (i32, i32) {
    %c0_i32 = arith.constant 0 : i32
    %c0_i32_0 = arith.constant 0 : i32
    return %arg0, %c0_i32 : i32, i32
  }
  func.func @transform_1(%arg0: i32, %arg1: i32) -> (i32, i32) {
    %c0_i32 = arith.constant 0 : i32
    %c0_i32_0 = arith.constant 0 : i32
    return %arg0, %c0_i32 : i32, i32
  }
  func.func @transform_2(%arg0: i32, %arg1: i32) -> (i32, i32) {
    %c0_i32 = arith.constant 0 : i32
    %c0_i32_0 = arith.constant 0 : i32
    return %arg0, %c0_i32 : i32, i32
  }
  func.func @transform_3(%arg0: i32, %arg1: i32) -> (i32, i32) {
    %c0_i32 = arith.constant 0 : i32
    %c0_i32_0 = arith.constant 0 : i32
    return %arg1, %c0_i32 : i32, i32
  }
  func.func @transform_4(%arg0: i32, %arg1: i32) -> (i32, i32) {
    %c0_i32 = arith.constant 0 : i32
    %c0_i32_0 = arith.constant 0 : i32
    return %c0_i32, %arg1 : i32, i32
  }
  func.func @transform_5(%arg0: i32, %arg1: i32) -> (i32, i32) {
    %c0_i32 = arith.constant 0 : i32
    %c0_i32_0 = arith.constant 0 : i32
    return %c0_i32, %arg1 : i32, i32
  }
  func.func @transform_6(%arg0: i32, %arg1: i32) -> (i32, i32) {
    %c0_i32 = arith.constant 0 : i32
    %c0_i32_0 = arith.constant 0 : i32
    return %arg0, %c0_i32 : i32, i32
  }
}

</mosaic_0001>

<llo_original>
// kernel: tpu_custom_call.1
$region0: #{tpu_custom_call.1}
  #allocation0 [shape = 'u32[]', space=smem, size = 0x4, offset = 0x4, fixed_abs, tag = 'smem constant byte address 0x4 - core index']
  #allocation1 [shape = 'u32[72,128]{1,0:T(1,128)}', space=vmem, size = 0x9000, scoped, tag = 'internal scratch']
  #allocation2 [shape = 'f32[16,1]{1,0:T(8,128)}', space=vmem, size = 0x2000, scoped, tag = 'scratch operand']
  #allocation3 [shape = 'f32[16,1]{1,0:T(8,128)}', space=vmem, size = 0x2000, scoped, tag = 'scratch operand']
  %s0 = inlined_call_operand.vmem [shape: f32[16,32], index: 0, kind: input, shape index: {}]
  %s1 = inlined_call_operand.vmem [shape: f32[16,1], index: 1, kind: input, shape index: {}]
  %s2 = inlined_call_operand.vmem [shape: f32[16,1], index: 2, kind: input, shape index: {}]
  %s3 = inlined_call_operand.vmem [shape: f32[16,32], index: 3, kind: input, shape index: {}]
  %s4 = inlined_call_operand.vmem [shape: f32[1,16], index: 4, kind: input, shape index: {}]
  %s5 = inlined_call_operand.vmem [shape: f32[1,16], index: 5, kind: input, shape index: {}]
  %s6 = inlined_call_operand.vmem [shape: f32[16,1], index: 6, kind: output, shape index: {}]
  %s7 = sld [smem:[#allocation0]]
  $region42: #{tpu_custom_call.1} parent=0
    _
  %s9 = ssub.s32 1, %s7
  %s10 = scalar_select 0, %s9, %s7
  // Predicated region
  $region2: #{tpu_custom_call.1} parent=0 // pred_check
    _
  $region3: #{tpu_custom_call.1} parent=0 // pred_check_branch
    %12 = sbr.rel (0) target = $region5
  $region4: #{tpu_custom_call.1} parent=0 // pred_region
    _
  $region5: #{tpu_custom_call.1} parent=0 // pred_fallthru
    _
  // Predicated region
  $region6: #{tpu_custom_call.1} parent=0 // pred_check
    _
  $region7: #{tpu_custom_call.1} parent=0 // pred_check_branch
    %14 = sbr.rel (0) target = $region9
  $region8: #{tpu_custom_call.1} parent=0 // pred_region
    _
  $region9: #{tpu_custom_call.1} parent=0 // pred_fallthru
    _
  // Predicated region
  $region10: #{tpu_custom_call.1} parent=0 // pred_check
    _
  $region11: #{tpu_custom_call.1} parent=0 // pred_check_branch
    %16 = sbr.rel (0) target = $region13
  $region12: #{tpu_custom_call.1} parent=0 // pred_region
    _
  $region13: #{tpu_custom_call.1} parent=0 // pred_fallthru
    _
  // Predicated region
  $region14: #{tpu_custom_call.1} parent=0 // pred_check
    _
  $region15: #{tpu_custom_call.1} parent=0 // pred_check_branch
    %18 = sbr.rel (0) target = $region17
  $region16: #{tpu_custom_call.1} parent=0 // pred_region
    _
  $region17: #{tpu_custom_call.1} parent=0 // pred_fallthru
    _
  // Predicated region
  $region18: #{tpu_custom_call.1} parent=0 // pred_check
    _
  $region19: #{tpu_custom_call.1} parent=0 // pred_check_branch
    %20 = sbr.rel (0) target = $region21
  $region20: #{tpu_custom_call.1} parent=0 // pred_region
    _
  $region21: #{tpu_custom_call.1} parent=0 // pred_fallthru
    _
  // Predicated region
  $region22: #{tpu_custom_call.1} parent=0 // pred_check
    _
  $region23: #{tpu_custom_call.1} parent=0 // pred_check_branch
    %22 = sbr.rel (0) target = $region25
  $region24: #{tpu_custom_call.1} parent=0 // pred_region
    _
  $region25: #{tpu_custom_call.1} parent=0 // pred_fallthru
    _
  %p23 = scmp.eq.s32.totalorder 0, 0
  // Predicated region
  $region26: #{tpu_custom_call.1} parent=0 // pred_check
    %p24 = pneg %p23
  $region27: #{tpu_custom_call.1} parent=0 // pred_check_branch
    %26 = sbr.rel (%p24) target = $region29
  $region28: #{tpu_custom_call.1} parent=0 // pred_region
    %vm27 = vcmask 7168
    %28 = vst.msk [vmem:[#allocation2] sm:$0xff] %vm27, -inf
    %29 = vst.msk [vmem:[#allocation2 + $0x8] sm:$0xff] %vm27, -inf
    %30 = vst.msk [vmem:[#allocation3] sm:$0xff] %vm27, 0.0
    %31 = vst.msk [vmem:[#allocation3 + $0x8] sm:$0xff] %vm27, 0.0
  $region29: #{tpu_custom_call.1} parent=0 // pred_fallthru
    _
  %v32 = vld [vmem:[%s0] sm:$0xff]
  %v33 = vld [vmem:[%s0 + $0x8] sm:$0xff]
  %v34 = vld [vmem:[%s3] sm:$0xff]
  %v35 = vld [vmem:[%s3 + $0x8] sm:$0xff]
  %vm36 = vcmask 261120
  %v38 = vsel %vm36, %v32, 0
  %v41 = vsel %vm36, %v33, 0
  %v44 = vsel %vm36, %v34, 0
  %v47 = vsel %vm36, %v35, 0
  %49 = vmatpush.xpose.msra.mxu0 0.0
  %50 = vmatpush.xpose.msra.mxu0 0.0
  %51 = vmatpush.xpose.msra.mxu0 0.0
  %52 = vmatpush.xpose.msra.mxu0 0.0
  %53 = vmatpush.xpose.msra.mxu0 0.0
  %54 = vmatpush.xpose.msra.mxu0 0.0
  %55 = vmatpush.xpose.msra.mxu0 0.0
  %56 = vmatpush.xpose.msra.mxu0 0.0
  %57 = vmatpush.xpose.msra.mxu0 0.0
  %58 = vmatpush.xpose.msra.mxu0 0.0
  %59 = vmatpush.xpose.msra.mxu0 0.0
  %60 = vmatpush.xpose.msra.mxu0 0.0
  %61 = vmatpush.xpose.msra.mxu0 0.0
  %62 = vmatpush.xpose.msra.mxu0 0.0
  %63 = vmatpush.xpose.msra.mxu0 %v47
  %64 = vmatpush.xpose.msra.mxu0 %v44
  %65 = vmatmul.f32.gmra.mxu0 %v38
  %v66 = vpop.f32.mrf.mxu0
  %v67 = vadd.f32 0.0, %v66
  %68 = vmatmul.f32.gmra.mxu0 %v41
  %v69 = vpop.f32.mrf.mxu0
  %v70 = vadd.f32 0.0, %v69
  %71 = vdwg.mxu0
  %v72 = vld [vmem:[%s1] sm:$0xff]
  %v73 = vld [vmem:[%s1 + $0x8] sm:$0xff]
  %75 = vset.pattern.permute.xlu0 0
  %76 = vperm.xlu0 %75, %v72
  %v77 = vpop.permute.xlu0 %76
  %80 = vset.pattern.permute.xlu0 0
  %81 = vperm.xlu0 %80, %v73
  %v82 = vpop.permute.xlu0 %81
  %v84 = vmul.f32 %v67, %v77
  %v85 = vmul.f32 %v70, %v82
  %v86 = vld [vmem:[%s2] sm:$0xff]
  %v87 = vld [vmem:[%s2 + $0x8] sm:$0xff]
  %89 = vset.pattern.permute.xlu0 0
  %90 = vperm.xlu0 %89, %v86
  %v91 = vpop.permute.xlu0 %90
  %94 = vset.pattern.permute.xlu0 0
  %95 = vperm.xlu0 %94, %v87
  %v96 = vpop.permute.xlu0 %95
  %v98 = vadd.f32 %v84, %v91
  %v99 = vadd.f32 %v85, %v96
  %v100 = vld [vmem:[%s4] sm:$0x1]
  %v102 = vperm.slane %v100, 0
  %v104 = vadd.f32 %v98, %v102
  %v105 = vadd.f32 %v99, %v102
  %v106 = vrsqrt.pop %v104
  %v107 = vmul.f32 %v106, %v104
  %v108 = vmul.f32 %v107, %v106
  %v109 = vmul.f32 0.5, %v108
  %v110 = vsub.f32 1.5, %v109
  %v111 = vmul.f32 %v106, %v110
  %v112 = vmul.f32 %v104, %v111
  %vm113 = vcmp.eq.f32.partialorder %v104, inf
  %v114 = vsel %vm113, %v104, %v112
  %vm115 = vcmp.eq.f32.partialorder %v104, 0.0
  %v116 = vand.u32 %v104, 2147483648
  %v117 = vsel %vm115, %v116, %v114
  %v118 = vrsqrt.pop %v105
  %v119 = vmul.f32 %v118, %v105
  %v120 = vmul.f32 %v119, %v118
  %v121 = vmul.f32 0.5, %v120
  %v122 = vsub.f32 1.5, %v121
  %v123 = vmul.f32 %v118, %v122
  %v124 = vmul.f32 %v105, %v123
  %vm125 = vcmp.eq.f32.partialorder %v105, inf
  %v126 = vsel %vm125, %v105, %v124
  %vm127 = vcmp.eq.f32.partialorder %v105, 0.0
  %v128 = vand.u32 %v105, 2147483648
  %v129 = vsel %vm127, %v128, %v126
  %v130 = vld [vmem:[%s5] sm:$0x1]
  %v132 = vperm.slane %v130, 0
  %v134 = vadd.f32 %v132, %v117
  %v135 = vadd.f32 %v132, %v129
  %v136 = vadd.f32 %v117, 15.0
  %v137 = vadd.f32 %v129, 15.0
  %v138 = vlog2.pop %v136
  %v139 = vmul.f32 %v138, 0.6931472
  %v140 = vlog2.pop %v137
  %v141 = vmul.f32 %v140, 0.6931472
  %v142 = vmul.f32 %v139, 15.0
  %v143 = vmul.f32 %v141, 15.0
  %v144 = vsub.f32 %v134, %v142
  %v145 = vsub.f32 %v135, %v143
  %v146 = vlog2.pop %v117
  %v147 = vmul.f32 %v146, 0.6931472
  %v148 = vlog2.pop %v129
  %v149 = vmul.f32 %v148, 0.6931472
  %v150 = vmul.f32 %v147, 0.5
  %v151 = vmul.f32 %v149, 0.5
  %v152 = vsub.f32 %v144, %v150
  %v153 = vsub.f32 %v145, %v151
  %v154 = vld [vmem:[#allocation2] sm:$0xff]
  %v155 = vld [vmem:[#allocation2 + $0x8] sm:$0xff]
  %vm156 = vcmask 130048
  %v157 = vsel %vm156, %v152, -inf
  %158 = vmax.xlane.f32.xlu0 %v157
  %v159 = vpop.xlane.xlu0 %158
  %v160 = vsel %vm156, %v153, -inf
  %161 = vmax.xlane.f32.xlu0 %v160
  %v162 = vpop.xlane.xlu0 %161
  %v163 = vmax.f32 %v154, %v159
  %v164 = vmax.f32 %v155, %v162
  %v165 = vsub.f32 %v154, %v163
  %v166 = vsub.f32 %v155, %v164
  %v167 = vmul.f32 %v165, 1.442695
  %v168 = vpow.pop %v167
  %v169 = vmul.f32 %v166, 1.442695
  %v170 = vpow.pop %v169
  %v171 = vld [vmem:[#allocation3] sm:$0xff]
  %v172 = vld [vmem:[#allocation3 + $0x8] sm:$0xff]
  %v173 = vmul.f32 %v168, %v171
  %v174 = vmul.f32 %v170, %v172
  %176 = vset.pattern.permute.xlu0 0
  %177 = vperm.xlu0 %176, %v163
  %v178 = vpop.permute.xlu0 %177
  %181 = vset.pattern.permute.xlu0 0
  %182 = vperm.xlu0 %181, %v164
  %v183 = vpop.permute.xlu0 %182
  %v185 = vsub.f32 %v152, %v178
  %v186 = vsub.f32 %v153, %v183
  %v187 = vmul.f32 %v185, 1.442695
  %v188 = vpow.pop %v187
  %v189 = vmul.f32 %v186, 1.442695
  %v190 = vpow.pop %v189
  %v191 = vsel %vm156, %v188, 0.0
  %192 = vadd.xlane.f32.xlu0 %v191
  %v193 = vpop.xlane.xlu0 %192
  %v194 = vsel %vm156, %v190, 0.0
  %195 = vadd.xlane.f32.xlu0 %v194
  %v196 = vpop.xlane.xlu0 %195
  %v197 = vadd.f32 %v173, %v193
  %v198 = vadd.f32 %v174, %v196
  %vm199 = vcmask 7168
  %200 = vst.msk [vmem:[#allocation3] sm:$0xff] %vm199, %v197
  %201 = vst.msk [vmem:[#allocation3 + $0x8] sm:$0xff] %vm199, %v198
  %202 = vst.msk [vmem:[#allocation2] sm:$0xff] %vm199, %v163
  %203 = vst.msk [vmem:[#allocation2 + $0x8] sm:$0xff] %vm199, %v164
  // Predicated region
  $region30: #{tpu_custom_call.1} parent=0 // pred_check
    %p204 = pneg %p23
  $region31: #{tpu_custom_call.1} parent=0 // pred_check_branch
    %206 = sbr.rel (%p204) target = $region33
  $region32: #{tpu_custom_call.1} parent=0 // pred_region
    %v207 = vld [vmem:[#allocation2] sm:$0xff]
    %v208 = vld [vmem:[#allocation2 + $0x8] sm:$0xff]
    %v209 = vld [vmem:[#allocation3] sm:$0xff]
    %v210 = vld [vmem:[#allocation3 + $0x8] sm:$0xff]
    %v211 = vlog2.pop %v209
    %v212 = vmul.f32 %v211, 0.6931472
    %v213 = vlog2.pop %v210
    %v214 = vmul.f32 %v213, 0.6931472
    %v215 = vadd.f32 %v207, %v212
    %v216 = vadd.f32 %v208, %v214
    %217 = vst.msk [vmem:[%s6] sm:$0xff] %vm199, %v215
    %218 = vst.msk [vmem:[%s6 + $0x8] sm:$0xff] %vm199, %v216
  $region33: #{tpu_custom_call.1} parent=0 // pred_fallthru
    _
  // Predicated region
  $region34: #{tpu_custom_call.1} parent=0 // pred_check
    _
  $region35: #{tpu_custom_call.1} parent=0 // pred_check_branch
    %220 = sbr.rel (0) target = $region37
  $region36: #{tpu_custom_call.1} parent=0 // pred_region
    _
  $region37: #{tpu_custom_call.1} parent=0 // pred_fallthru
    _
  // Predicated region
  $region38: #{tpu_custom_call.1} parent=0 // pred_check
    _
  $region39: #{tpu_custom_call.1} parent=0 // pred_check_branch
    %222 = sbr.rel (0) target = $region41
  $region40: #{tpu_custom_call.1} parent=0 // pred_region
    _
  $region41: #{tpu_custom_call.1} parent=0 // pred_fallthru
    _

</llo_original>
